<compile_context>
chip_gen: v7x
topology: tpu7x:2x2x1
jax: 0.10.0
libtpu: 0.0.40
codegen_flags: <defaults>
</compile_context>

<pallas_src>
import functools

import jax
import jax.numpy as jnp
from jax.experimental import pallas as pl
from jax.experimental.pallas import tpu as pltpu

_LANE = 128
_SUBLANE = 8


def _lsce_kernel(x_ref, tgt_ref, loss_ref, m_sc, e_sc, s_sc, t_sc, *,
                 confidence, smooth_scale, num_classes, tile_c, ragged_c):
    """One (TILE_N, TILE_C) tile of the fused label-smoothing CE forward."""
    j = pl.program_id(1)  # class-tile index (reduction axis, runs last)

    @pl.when(j == 0)
    def _init():
        m_sc[...] = jnp.full_like(m_sc, -jnp.inf)   # running row max
        e_sc[...] = jnp.zeros_like(e_sc)            # running sum(exp(x - m))
        s_sc[...] = jnp.zeros_like(s_sc)            # running sum(x)
        t_sc[...] = jnp.zeros_like(t_sc)            # running x[target]

    x = x_ref[...].astype(jnp.float32)              # (TILE_N, TILE_C) in f32
    tgt = tgt_ref[...]                              # (TILE_N, 1) int32
    tc = x.shape[-1]

    # Global class index of each lane as a single (1, TILE_C) row; broadcasting
    # in the compares avoids a full (TILE_N, TILE_C) int32 temporary.
    col = j * tile_c + jax.lax.broadcasted_iota(jnp.int32, (1, tc), 1)

    # Logit at the target class (one-hot select, no cross-lane gather).  Padded
    # lanes can never equal a valid target id, so no extra masking is needed
    # even on a ragged last class tile.
    t_sc[...] += jnp.sum(jnp.where(col == tgt, x, 0.0), axis=-1, keepdims=True)

    def _accumulate(x_max, x_sum):
        # Online logsumexp update + running sum of logits for this tile.
        m_blk = jnp.max(x_max, axis=-1, keepdims=True)          # (TILE_N, 1)
        m_new = jnp.maximum(m_sc[...], m_blk)
        alpha = jnp.exp(m_sc[...] - m_new)
        p_sum = jnp.sum(jnp.exp(x_max - m_new), axis=-1, keepdims=True)
        e_sc[...] = alpha * e_sc[...] + p_sum
        m_sc[...] = m_new
        s_sc[...] += jnp.sum(x_sum, axis=-1, keepdims=True)

    if not ragged_c:
        # C divides evenly into class tiles: no lane masking anywhere.
        _accumulate(x, x)
    else:
        last = pl.num_programs(1) - 1

        @pl.when(j != last)
        def _fast():
            _accumulate(x, x)

        @pl.when(j == last)
        def _masked():
            valid = col < num_classes                # (1, TILE_C), broadcast
            _accumulate(jnp.where(valid, x, -jnp.inf),
                        jnp.where(valid, x, 0.0))

    @pl.when(j == pl.num_programs(1) - 1)
    def _finalize():
        lse = m_sc[...] + jnp.log(e_sc[...])         # m + log(sum(exp(x - m)))
        # confidence * (lse - x_t) + smoothing * (lse - sum(x)/C)
        loss_ref[...] = lse - confidence * t_sc[...] - smooth_scale * s_sc[...]


def _round_down(v, m):
    return max(m, (v // m) * m)


def _vmem_budget_bytes():
    """~75% of this generation's per-core VMEM (v7x: ~48 MiB, v5e/v6e: ~96 MiB)."""
    cap = 64 * 1024 * 1024  # conservative fallback (v7x-sized) if query fails
    try:
        cap = int(pltpu.get_tpu_info().vmem_capacity_bytes)
    except Exception:
        pass
    return (cap * 3) // 4


def _choose_tiles(n, c, in_itemsize, budget, tile_n=None, tile_c=None):
    """Size (TILE_N, TILE_C) from the f32 working set against the VMEM budget.

    Per logit element: 2 input-dtype pipeline buffers + ~2 live f32 copies of
    the block inside the kernel.  Per row: 4 scratch accumulators plus the
    double-buffered output and target columns, each lane-padded to 512 B.
    """
    f32 = 4
    per_elem = 2 * in_itemsize + 2 * f32
    per_row = 8 * _LANE * f32                      # 4 KiB of (TILE_N, 1) buffers
    budget = max(int(budget), 4 * 1024 * 1024)

    # --- class tile ---
    if tile_c is not None:
        tile_c = c if tile_c >= c else _round_down(tile_c, _LANE)
    elif _SUBLANE * (c * per_elem + per_row) <= budget:
        tile_c = c                                  # full class row per block
    else:
        tile_c = _round_down(budget // (_SUBLANE * per_elem), _LANE)
        tile_c = min(tile_c, _round_down(c, _LANE))

    # --- batch tile (no artificial cap; bounded by the VMEM budget) ---
    row_bytes = tile_c * per_elem + per_row
    if tile_n is None:
        tile_n = _round_down(budget // row_bytes, _SUBLANE)
    elif tile_n < n:
        tile_n = _round_down(tile_n, _SUBLANE)
    if tile_n >= n:
        tile_n = n
        # Prefer >= 2 batch tiles when N is large so the "parallel" axis can be
        # split across v7x's two TensorCores (one cheap extra step elsewhere).
        if n >= 256:
            half = -(-n // 2)
            tile_n = -(-half // _SUBLANE) * _SUBLANE
    return int(tile_n), int(tile_c)


def label_smoothing_cross_entropy(x, target, smoothing=0.1, *,
                                  tile_n=None, tile_c=None):
    """Pallas equivalent of timm LabelSmoothingCrossEntropy.forward.

    x: (N, C) logits (float32 or bfloat16), target: (N,) int class ids.
    Returns the scalar mean loss.
    """
    # NOTE: the reference module stores `class_weights` but never uses them in
    # forward, so they are intentionally not part of this kernel.
    assert smoothing < 1.0
    n, c = x.shape
    tgt = target.reshape(n, 1).astype(jnp.int32)

    in_itemsize = jnp.dtype(x.dtype).itemsize
    budget = _vmem_budget_bytes()
    tile_n, tile_c = _choose_tiles(n, c, in_itemsize, budget, tile_n, tile_c)
    grid = (pl.cdiv(n, tile_n), pl.cdiv(c, tile_c))
    ragged_c = (c % tile_c) != 0

    kernel = functools.partial(
        _lsce_kernel,
        confidence=float(1.0 - smoothing),
        smooth_scale=float(smoothing) / float(c),
        num_classes=c,
        tile_c=tile_c,
        ragged_c=ragged_c,
    )

    row_losses = pl.pallas_call(
        kernel,
        out_shape=jax.ShapeDtypeStruct((n, 1), jnp.float32),
        grid=grid,
        in_specs=[
            pl.BlockSpec((tile_n, tile_c), lambda i, j: (i, j)),  # logits
            pl.BlockSpec((tile_n, 1), lambda i, j: (i, 0)),       # targets
        ],
        out_specs=pl.BlockSpec((tile_n, 1), lambda i, j: (i, 0)),  # per-row loss
        scratch_shapes=[pltpu.VMEM((tile_n, 1), jnp.float32)] * 4,
        compiler_params=pltpu.CompilerParams(
            dimension_semantics=("parallel", "arbitrary"),
            vmem_limit_bytes=int(budget),
        ),
    )(x, tgt)

    # Tiny final reduction (N floats) in plain JAX.
    return jnp.mean(row_losses)


def _reference(x, target, smoothing=0.1):
    # Pure-JAX reference mirroring the PyTorch code.
    logprobs = jax.nn.log_softmax(x.astype(jnp.float32), axis=-1)
    nll = -jnp.take_along_axis(logprobs, target[:, None], axis=-1)[:, 0]
    smooth = -jnp.mean(logprobs, axis=-1)
    loss = (1.0 - smoothing) * nll + smoothing * smooth
    return jnp.mean(loss)


if __name__ == "__main__":
    smoothing = 0.1
    key = jax.random.PRNGKey(0)
    k1, k2, k3, k4, k5, k6 = jax.random.split(key, 6)

    # Case 1: tiny vreg-friendly shape, single-tile grid, unmasked fast path.
    x1 = jax.random.normal(k1, (8, 128), dtype=jnp.float32)
    t1 = jax.random.randint(k2, (8,), 0, 128, dtype=jnp.int32)
    loss1 = jax.block_until_ready(label_smoothing_cross_entropy(x1, t1, smoothing))
    ref1 = _reference(x1, t1, smoothing)
    assert jnp.allclose(loss1, ref1, atol=1e-4, rtol=1e-4), (loss1, ref1)

    # Case 2: ragged batch + ragged class tiling — exercises the 2-D grid, the
    # online logsumexp across C tiles, the unmasked fast path (j=0) and the
    # masked last class tile (j=1).
    x2 = jax.random.normal(k3, (40, 384), dtype=jnp.float32)
    t2 = jax.random.randint(k4, (40,), 0, 384, dtype=jnp.int32)
    loss2 = jax.block_until_ready(
        label_smoothing_cross_entropy(x2, t2, smoothing, tile_n=16, tile_c=256))
    ref2 = _reference(x2, t2, smoothing)
    assert jnp.allclose(loss2, ref2, atol=1e-4, rtol=1e-4), (loss2, ref2)

    # Case 3: bf16 logits, ImageNet-style unaligned full-C block (C=1000),
    # in-kernel upcast to f32.
    x3 = jax.random.normal(k5, (24, 1000), dtype=jnp.bfloat16)
    t3 = jax.random.randint(k6, (24,), 0, 1000, dtype=jnp.int32)
    loss3 = jax.block_until_ready(label_smoothing_cross_entropy(x3, t3, smoothing))
    ref3 = _reference(x3, t3, smoothing)
    assert jnp.allclose(loss3, ref3, atol=1e-3, rtol=1e-3), (loss3, ref3)

    print("KERNEL_OK")
</pallas_src>

<mosaic_0001>
module attributes {stable_mosaic.version = 11 : i64} {
  func.func @_lsce_kernel(%arg0: i32, %arg1: i32, %arg2: memref<8x128xf32, #tpu.memory_space<vmem>>, %arg3: memref<8x1xi32, #tpu.memory_space<vmem>>, %arg4: memref<8x1xf32, #tpu.memory_space<vmem>>, %arg5: memref<8x1xf32, #tpu.memory_space<vmem>>, %arg6: memref<8x1xf32, #tpu.memory_space<vmem>>, %arg7: memref<8x1xf32, #tpu.memory_space<vmem>>, %arg8: memref<8x1xf32, #tpu.memory_space<vmem>>) attributes {dimension_semantics = [#tpu.dimension_semantics<parallel>, #tpu.dimension_semantics<arbitrary>], iteration_bounds = array<i64: 1, 1>, scalar_prefetch = 0 : i64, scratch_operands = 4 : i64, tpu.core_type = #tpu.core_type<tc>, window_params = [{transform_indices = @transform_0, window_bounds = array<i64: 8, 128>}, {transform_indices = @transform_1, window_bounds = array<i64: 8, 1>}, {transform_indices = @transform_2, window_bounds = array<i64: 8, 1>}]} {
    %c0_i32 = arith.constant 0 : i32
    %0 = arith.cmpi eq, %arg1, %c0_i32 : i32
    %1 = arith.extui %0 : i1 to i32
    %c0_i32_0 = arith.constant 0 : i32
    %2 = arith.cmpi ne, %1, %c0_i32_0 : i32
    scf.if %2 {
      %cst_28 = arith.constant 0xFF800000 : f32
      %44 = vector.broadcast %cst_28 : f32 to vector<8x1xf32>
      %c0_29 = arith.constant 0 : index
      %c0_30 = arith.constant 0 : index
      %45 = vector.load %arg5[%c0_29, %c0_30] : memref<8x1xf32, #tpu.memory_space<vmem>>, vector<8x1xf32>
      tpu.vector_store %arg5[%c0_29, %c0_30], %44 {strides = array<i32>} : memref<8x1xf32, #tpu.memory_space<vmem>>, vector<8x1xf32>,
      %cst_31 = arith.constant 0.000000e+00 : f32
      %46 = vector.broadcast %cst_31 : f32 to vector<8x1xf32>
      %c0_32 = arith.constant 0 : index
      %c0_33 = arith.constant 0 : index
      %47 = vector.load %arg6[%c0_32, %c0_33] : memref<8x1xf32, #tpu.memory_space<vmem>>, vector<8x1xf32>
      tpu.vector_store %arg6[%c0_32, %c0_33], %46 {strides = array<i32>} : memref<8x1xf32, #tpu.memory_space<vmem>>, vector<8x1xf32>,
      %cst_34 = arith.constant 0.000000e+00 : f32
      %48 = vector.broadcast %cst_34 : f32 to vector<8x1xf32>
      %c0_35 = arith.constant 0 : index
      %c0_36 = arith.constant 0 : index
      %49 = vector.load %arg7[%c0_35, %c0_36] : memref<8x1xf32, #tpu.memory_space<vmem>>, vector<8x1xf32>
      tpu.vector_store %arg7[%c0_35, %c0_36], %48 {strides = array<i32>} : memref<8x1xf32, #tpu.memory_space<vmem>>, vector<8x1xf32>,
      %cst_37 = arith.constant 0.000000e+00 : f32
      %50 = vector.broadcast %cst_37 : f32 to vector<8x1xf32>
      %c0_38 = arith.constant 0 : index
      %c0_39 = arith.constant 0 : index
      %51 = vector.load %arg8[%c0_38, %c0_39] : memref<8x1xf32, #tpu.memory_space<vmem>>, vector<8x1xf32>
      tpu.vector_store %arg8[%c0_38, %c0_39], %50 {strides = array<i32>} : memref<8x1xf32, #tpu.memory_space<vmem>>, vector<8x1xf32>,
    } else {
    }
    %c0 = arith.constant 0 : index
    %c0_1 = arith.constant 0 : index
    %3 = vector.load %arg2[%c0, %c0_1] : memref<8x128xf32, #tpu.memory_space<vmem>>, vector<8x128xf32>
    %c0_2 = arith.constant 0 : index
    %c0_3 = arith.constant 0 : index
    %4 = vector.load %arg3[%c0_2, %c0_3] : memref<8x1xi32, #tpu.memory_space<vmem>>, vector<8x1xi32>
    %c128_i32 = arith.constant 128 : i32
    %5 = arith.muli %arg1, %c128_i32 : i32
    %6 = tpu.iota {dimensions = array<i32: 1>} : vector<1x128xi32>
    %7 = vector.broadcast %5 : i32 to vector<1x128xi32>
    %8 = arith.addi %7, %6 : vector<1x128xi32>
    %c0_4 = arith.constant 0 : index
    %c0_5 = arith.constant 0 : index
    %9 = vector.load %arg8[%c0_4, %c0_5] : memref<8x1xf32, #tpu.memory_space<vmem>>, vector<8x1xf32>
    %10 = vector.broadcast %8 : vector<1x128xi32> to vector<8x128xi32>
    %11 = vector.broadcast %4 : vector<8x1xi32> to vector<8x128xi32>
    %12 = arith.cmpi eq, %10, %11 : vector<8x128xi32>
    %cst = arith.constant 0.000000e+00 : f32
    %13 = vector.broadcast %cst : f32 to vector<8x128xf32>
    %14 = arith.select %12, %3, %13 : vector<8x128xi1>, vector<8x128xf32>
    %cst_6 = arith.constant dense<0.000000e+00> : vector<8xf32>
    %15 = vector.multi_reduction <add>, %14, %cst_6 [1] : vector<8x128xf32> to vector<8xf32>
    %16 = vector.shape_cast %15 : vector<8xf32> to vector<8x1xf32>
    %17 = arith.addf %9, %16 : vector<8x1xf32>
    %c0_7 = arith.constant 0 : index
    %c0_8 = arith.constant 0 : index
    %18 = vector.load %arg8[%c0_7, %c0_8] : memref<8x1xf32, #tpu.memory_space<vmem>>, vector<8x1xf32>
    tpu.vector_store %arg8[%c0_7, %c0_8], %17 {strides = array<i32>} : memref<8x1xf32, #tpu.memory_space<vmem>>, vector<8x1xf32>,
    %cst_9 = arith.constant dense<0xFF800000> : vector<8xf32>
    %19 = vector.multi_reduction <maximumf>, %3, %cst_9 [1] : vector<8x128xf32> to vector<8xf32>
    %20 = vector.shape_cast %19 : vector<8xf32> to vector<8x1xf32>
    %c0_10 = arith.constant 0 : index
    %c0_11 = arith.constant 0 : index
    %21 = vector.load %arg5[%c0_10, %c0_11] : memref<8x1xf32, #tpu.memory_space<vmem>>, vector<8x1xf32>
    %22 = arith.maximumf %21, %20 : vector<8x1xf32>
    %c0_12 = arith.constant 0 : index
    %c0_13 = arith.constant 0 : index
    %23 = vector.load %arg5[%c0_12, %c0_13] : memref<8x1xf32, #tpu.memory_space<vmem>>, vector<8x1xf32>
    %24 = arith.subf %23, %22 : vector<8x1xf32>
    %25 = math.exp %24 : vector<8x1xf32>
    %26 = vector.broadcast %22 : vector<8x1xf32> to vector<8x128xf32>
    %27 = arith.subf %3, %26 : vector<8x128xf32>
    %28 = math.exp %27 : vector<8x128xf32>
    %cst_14 = arith.constant dense<0.000000e+00> : vector<8xf32>
    %29 = vector.multi_reduction <add>, %28, %cst_14 [1] : vector<8x128xf32> to vector<8xf32>
    %30 = vector.shape_cast %29 : vector<8xf32> to vector<8x1xf32>
    %c0_15 = arith.constant 0 : index
    %c0_16 = arith.constant 0 : index
    %31 = vector.load %arg6[%c0_15, %c0_16] : memref<8x1xf32, #tpu.memory_space<vmem>>, vector<8x1xf32>
    %32 = arith.mulf %25, %31 : vector<8x1xf32>
    %33 = arith.addf %32, %30 : vector<8x1xf32>
    %c0_17 = arith.constant 0 : index
    %c0_18 = arith.constant 0 : index
    %34 = vector.load %arg6[%c0_17, %c0_18] : memref<8x1xf32, #tpu.memory_space<vmem>>, vector<8x1xf32>
    tpu.vector_store %arg6[%c0_17, %c0_18], %33 {strides = array<i32>} : memref<8x1xf32, #tpu.memory_space<vmem>>, vector<8x1xf32>,
    %c0_19 = arith.constant 0 : index
    %c0_20 = arith.constant 0 : index
    %35 = vector.load %arg5[%c0_19, %c0_20] : memref<8x1xf32, #tpu.memory_space<vmem>>, vector<8x1xf32>
    tpu.vector_store %arg5[%c0_19, %c0_20], %22 {strides = array<i32>} : memref<8x1xf32, #tpu.memory_space<vmem>>, vector<8x1xf32>,
    %c0_21 = arith.constant 0 : index
    %c0_22 = arith.constant 0 : index
    %36 = vector.load %arg7[%c0_21, %c0_22] : memref<8x1xf32, #tpu.memory_space<vmem>>, vector<8x1xf32>
    %cst_23 = arith.constant dense<0.000000e+00> : vector<8xf32>
    %37 = vector.multi_reduction <add>, %3, %cst_23 [1] : vector<8x128xf32> to vector<8xf32>
    %38 = vector.shape_cast %37 : vector<8xf32> to vector<8x1xf32>
    %39 = arith.addf %36, %38 : vector<8x1xf32>
    %c0_24 = arith.constant 0 : index
    %c0_25 = arith.constant 0 : index
    %40 = vector.load %arg7[%c0_24, %c0_25] : memref<8x1xf32, #tpu.memory_space<vmem>>, vector<8x1xf32>
    tpu.vector_store %arg7[%c0_24, %c0_25], %39 {strides = array<i32>} : memref<8x1xf32, #tpu.memory_space<vmem>>, vector<8x1xf32>,
    %c0_i32_26 = arith.constant 0 : i32
    %41 = arith.cmpi eq, %arg1, %c0_i32_26 : i32
    %42 = arith.extui %41 : i1 to i32
    %c0_i32_27 = arith.constant 0 : i32
    %43 = arith.cmpi ne, %42, %c0_i32_27 : i32
    scf.if %43 {
      %c0_28 = arith.constant 0 : index
      %c0_29 = arith.constant 0 : index
      %44 = vector.load %arg5[%c0_28, %c0_29] : memref<8x1xf32, #tpu.memory_space<vmem>>, vector<8x1xf32>
      %c0_30 = arith.constant 0 : index
      %c0_31 = arith.constant 0 : index
      %45 = vector.load %arg6[%c0_30, %c0_31] : memref<8x1xf32, #tpu.memory_space<vmem>>, vector<8x1xf32>
      %46 = math.log %45 : vector<8x1xf32>
      %47 = arith.addf %44, %46 : vector<8x1xf32>
      %c0_32 = arith.constant 0 : index
      %c0_33 = arith.constant 0 : index
      %48 = vector.load %arg8[%c0_32, %c0_33] : memref<8x1xf32, #tpu.memory_space<vmem>>, vector<8x1xf32>
      %cst_34 = arith.constant 0.899999976 : f32
      %49 = vector.broadcast %cst_34 : f32 to vector<8x1xf32>
      %50 = arith.mulf %49, %48 : vector<8x1xf32>
      %51 = arith.subf %47, %50 : vector<8x1xf32>
      %c0_35 = arith.constant 0 : index
      %c0_36 = arith.constant 0 : index
      %52 = vector.load %arg7[%c0_35, %c0_36] : memref<8x1xf32, #tpu.memory_space<vmem>>, vector<8x1xf32>
      %cst_37 = arith.constant 7.812500e-04 : f32
      %53 = vector.broadcast %cst_37 : f32 to vector<8x1xf32>
      %54 = arith.mulf %53, %52 : vector<8x1xf32>
      %55 = arith.subf %51, %54 : vector<8x1xf32>
      %c0_38 = arith.constant 0 : index
      %c0_39 = arith.constant 0 : index
      %56 = vector.load %arg4[%c0_38, %c0_39] : memref<8x1xf32, #tpu.memory_space<vmem>>, vector<8x1xf32>
      tpu.vector_store %arg4[%c0_38, %c0_39], %55 {strides = array<i32>} : memref<8x1xf32, #tpu.memory_space<vmem>>, vector<8x1xf32>,
    } else {
    }
    return
  }
  func.func @transform_0(%arg0: i32, %arg1: i32) -> (i32, i32) {
    %c0_i32 = arith.constant 0 : i32
    return %arg0, %arg1 : i32, i32
  }
  func.func @transform_1(%arg0: i32, %arg1: i32) -> (i32, i32) {
    %c0_i32 = arith.constant 0 : i32
    %c0_i32_0 = arith.constant 0 : i32
    return %arg0, %c0_i32 : i32, i32
  }
  func.func @transform_2(%arg0: i32, %arg1: i32) -> (i32, i32) {
    %c0_i32 = arith.constant 0 : i32
    %c0_i32_0 = arith.constant 0 : i32
    return %arg0, %c0_i32 : i32, i32
  }
}

</mosaic_0001>

<llo_original>
// kernel: tpu_custom_call.1
$region0: #{tpu_custom_call.1}
  #allocation0 [shape = 'u32[]', space=smem, size = 0x4, offset = 0x4, fixed_abs, tag = 'smem constant byte address 0x4 - core index']
  #allocation1 [shape = 'u32[144,128]{1,0:T(1,128)}', space=vmem, size = 0x12000, scoped, tag = 'internal scratch']
  #allocation2 [shape = 'f32[8,1]{1,0:T(8,128)}', space=vmem, size = 0x1000, scoped, tag = 'scratch operand']
  #allocation3 [shape = 'f32[8,1]{1,0:T(8,128)}', space=vmem, size = 0x1000, scoped, tag = 'scratch operand']
  #allocation4 [shape = 'f32[8,1]{1,0:T(8,128)}', space=vmem, size = 0x1000, scoped, tag = 'scratch operand']
  #allocation5 [shape = 'f32[8,1]{1,0:T(8,128)}', space=vmem, size = 0x1000, scoped, tag = 'scratch operand']
  %s0 = inlined_call_operand.vmem [shape: f32[8,128], index: 0, kind: input, shape index: {}]
  %s1 = inlined_call_operand.vmem [shape: s32[8,1], index: 1, kind: input, shape index: {}]
  %s2 = inlined_call_operand.vmem [shape: f32[8,1], index: 2, kind: output, shape index: {}]
  %s3 = sld [smem:[#allocation0]]
  $region26: #{tpu_custom_call.1} parent=0
    _
  %s5 = ssub.s32 1, %s3
  %s6 = scalar_select 0, %s5, %s3
  // Predicated region
  $region2: #{tpu_custom_call.1} parent=0 // pred_check
    _
  $region3: #{tpu_custom_call.1} parent=0 // pred_check_branch
    %8 = sbr.rel (0) target = $region5
  $region4: #{tpu_custom_call.1} parent=0 // pred_region
    _
  $region5: #{tpu_custom_call.1} parent=0 // pred_fallthru
    _
  // Predicated region
  $region6: #{tpu_custom_call.1} parent=0 // pred_check
    _
  $region7: #{tpu_custom_call.1} parent=0 // pred_check_branch
    %10 = sbr.rel (0) target = $region9
  $region8: #{tpu_custom_call.1} parent=0 // pred_region
    _
  $region9: #{tpu_custom_call.1} parent=0 // pred_fallthru
    _
  %p11 = scmp.eq.s32.totalorder 0, 0
  // Predicated region
  $region10: #{tpu_custom_call.1} parent=0 // pred_check
    %p12 = pneg %p11
  $region11: #{tpu_custom_call.1} parent=0 // pred_check_branch
    %14 = sbr.rel (%p12) target = $region13
  $region12: #{tpu_custom_call.1} parent=0 // pred_region
    %vm15 = vcmask 7168
    %16 = vst.msk [vmem:[#allocation2] sm:$0xff] %vm15, -inf
    %17 = vst.msk [vmem:[#allocation3] sm:$0xff] %vm15, 0.0
    %18 = vst.msk [vmem:[#allocation4] sm:$0xff] %vm15, 0.0
    %19 = vst.msk [vmem:[#allocation5] sm:$0xff] %vm15, 0.0
  $region13: #{tpu_custom_call.1} parent=0 // pred_fallthru
    _
  %v20 = vld [vmem:[%s0] sm:$0xff]
  %v21 = vld [vmem:[%s1] sm:$0xff]
  %s22 = smul.u32 0, 128
  %v23 = vlaneseq
  %v24 = vand.u32 %v23, 127
  %v25 = vstv %s22
  %v26 = vadd.s32 %v25, %v24
  %v27 = vld [vmem:[#allocation5] sm:$0xff]
  %28 = vset.pattern.permute.xlu0 0
  %29 = vperm.xlu0 %28, %v21
  %v30 = vpop.permute.xlu0 %29
  %vm31 = vcmp.eq.s32.totalorder %v26, %v30
  %v32 = vsel %vm31, %v20, 0.0
  %33 = vadd.xlane.f32.xlu0 %v32
  %v34 = vpop.xlane.xlu0 %33
  %v35 = vadd.f32 %v27, %v34
  %vm36 = vcmask 7168
  %37 = vst.msk [vmem:[#allocation5] sm:$0xff] %vm36, %v35
  %38 = vmax.xlane.f32.xlu0 %v20
  %v39 = vpop.xlane.xlu0 %38
  %v40 = vld [vmem:[#allocation2] sm:$0xff]
  %v41 = vmax.f32 %v40, %v39
  %v42 = vsub.f32 %v40, %v41
  %v43 = vmul.f32 %v42, 1.442695
  %v44 = vpow.pop %v43
  %46 = vset.pattern.permute.xlu0 0
  %47 = vperm.xlu0 %46, %v41
  %v48 = vpop.permute.xlu0 %47
  %v50 = vsub.f32 %v20, %v48
  %v51 = vmul.f32 %v50, 1.442695
  %v52 = vpow.pop %v51
  %53 = vadd.xlane.f32.xlu0 %v52
  %v54 = vpop.xlane.xlu0 %53
  %v55 = vld [vmem:[#allocation3] sm:$0xff]
  %v56 = vmul.f32 %v44, %v55
  %v57 = vadd.f32 %v56, %v54
  %58 = vst.msk [vmem:[#allocation3] sm:$0xff] %vm36, %v57
  %59 = vst.msk [vmem:[#allocation2] sm:$0xff] %vm36, %v41
  %v60 = vld [vmem:[#allocation4] sm:$0xff]
  %61 = vadd.xlane.f32.xlu0 %v20
  %v62 = vpop.xlane.xlu0 %61
  %v63 = vadd.f32 %v60, %v62
  %64 = vst.msk [vmem:[#allocation4] sm:$0xff] %vm36, %v63
  // Predicated region
  $region14: #{tpu_custom_call.1} parent=0 // pred_check
    %p65 = pneg %p11
  $region15: #{tpu_custom_call.1} parent=0 // pred_check_branch
    %67 = sbr.rel (%p65) target = $region17
  $region16: #{tpu_custom_call.1} parent=0 // pred_region
    %v68 = vld [vmem:[#allocation2] sm:$0xff]
    %v69 = vld [vmem:[#allocation3] sm:$0xff]
    %v70 = vlog2.pop %v69
    %v71 = vmul.f32 %v70, 0.6931472
    %v72 = vadd.f32 %v68, %v71
    %v73 = vld [vmem:[#allocation5] sm:$0xff]
    %v74 = vmul.f32 %v73, 0.9
    %v75 = vsub.f32 %v72, %v74
    %v76 = vld [vmem:[#allocation4] sm:$0xff]
    %v77 = vmul.f32 %v76, 0.00078125
    %v78 = vsub.f32 %v75, %v77
    %79 = vst.msk [vmem:[%s2] sm:$0xff] %vm36, %v78
  $region17: #{tpu_custom_call.1} parent=0 // pred_fallthru
    _
  // Predicated region
  $region18: #{tpu_custom_call.1} parent=0 // pred_check
    _
  $region19: #{tpu_custom_call.1} parent=0 // pred_check_branch
    %81 = sbr.rel (0) target = $region21
  $region20: #{tpu_custom_call.1} parent=0 // pred_region
    _
  $region21: #{tpu_custom_call.1} parent=0 // pred_fallthru
    _
  // Predicated region
  $region22: #{tpu_custom_call.1} parent=0 // pred_check
    _
  $region23: #{tpu_custom_call.1} parent=0 // pred_check_branch
    %83 = sbr.rel (0) target = $region25
  $region24: #{tpu_custom_call.1} parent=0 // pred_region
    _
  $region25: #{tpu_custom_call.1} parent=0 // pred_fallthru
    _

</llo_original>
